<compile_context>
chip_gen: v6e
topology: v6e:2x2x1
jax: 0.10.0
libtpu: 0.0.40
codegen_flags: <defaults>
</compile_context>

<pallas_src>
import itertools
from functools import partial

import numpy as np
import jax
import jax.numpy as jnp
from jax.experimental import pallas as pl
from jax.experimental.pallas import tpu as pltpu

_BOTTLENECK = 256


# ---------------------------------------------------------------------------
# Fused kernel: one grid step == one relation scale.
# ---------------------------------------------------------------------------
def _fused_trn_kernel(acts_ref, w1_ref, b1_ref, w2_ref, rmask_ref, b2tot_ref,
                      out_ref):
    """
    acts_ref : (R_max, N, D_max)  zero-padded relation activations of this scale
    w1_ref   : (D_max, 256)       zero rows past scale*H
    b1_ref   : (1, 256)
    w2_ref   : (256, C_pad)       zero cols past num_classes
    rmask_ref: (R_max*N, C_pad)   1.0 rows for real sampled relations, 0.0 for pads
    b2tot_ref: (1, C_pad)         sum over ALL sampled relations of b2 (added once)
    out_ref  : (N, C_pad)         f32, resident across the whole grid (accumulator)
    """
    s = pl.program_id(0)

    @pl.when(s == 0)
    def _zero():
        out_ref[...] = jnp.zeros_like(out_ref)

    R, N, D = acts_ref.shape
    # Fold the relation axis into the matmul M dimension: (R*N, D).
    a = jnp.maximum(acts_ref[...], 0.0)                       # ReLU
    a = a.reshape(R * N, D).astype(w1_ref.dtype)              # bf16 MXU feed
    h = jnp.dot(a, w1_ref[...],
                preferred_element_type=jnp.float32) + b1_ref[...]
    h = jnp.maximum(h, 0.0).astype(w2_ref.dtype)              # ReLU
    o = jnp.dot(h, w2_ref[...],
                preferred_element_type=jnp.float32)           # (R*N, C_pad)
    # Padded relations would contribute ReLU(b1) @ W2 -> mask them to exactly 0.
    o = o * rmask_ref[...]
    out_ref[...] += jnp.sum(o.reshape(R, N, -1), axis=0)

    @pl.when(s == pl.num_programs(0) - 1)
    def _finalize():
        # b2 hoisted out of the per-relation accumulation: add sum_r b2[scale(r)] once.
        out_ref[...] += b2tot_ref[...]


def _fused_scales_pallas(acts, w1, b1, w2, rmask_full, b2_total):
    S, R_max, N, D_max = acts.shape
    Dh = w1.shape[-1]
    C_pad = w2.shape[-1]
    return pl.pallas_call(
        _fused_trn_kernel,
        out_shape=jax.ShapeDtypeStruct((N, C_pad), jnp.float32),
        grid_spec=pltpu.PrefetchScalarGridSpec(
            num_scalar_prefetch=0,
            grid=(S,),
            in_specs=[
                pl.BlockSpec((pl.Squeezed(), R_max, N, D_max),
                             lambda s: (s, 0, 0, 0)),
                pl.BlockSpec((pl.Squeezed(), D_max, Dh), lambda s: (s, 0, 0)),
                pl.BlockSpec((pl.Squeezed(), 1, Dh), lambda s: (s, 0, 0)),
                pl.BlockSpec((pl.Squeezed(), Dh, C_pad), lambda s: (s, 0, 0)),
                pl.BlockSpec((pl.Squeezed(), R_max * N, C_pad),
                             lambda s: (s, 0, 0)),
                pl.BlockSpec((1, C_pad), lambda s: (0, 0)),
            ],
            out_specs=pl.BlockSpec((N, C_pad), lambda s: (0, 0)),
        ),
        compiler_params=pltpu.CompilerParams(
            # Single reduction axis over scales; output stays resident in VMEM.
            # TODO(synk): on v7x a "parallel" batch axis would engage the 2nd TensorCore,
            # but at N=2 the extra partial-sum writeback costs more than it saves.
            dimension_semantics=("arbitrary",)),
    )(acts, w1, b1, w2, rmask_full, b2_total)


# ---------------------------------------------------------------------------
# Jitted forward: one gather for all sampled relations + one pallas_call.
# ---------------------------------------------------------------------------
@partial(jax.jit, static_argnames=("num_classes",))
def _trn_forward(x, frame_idx, frame_mask, rel_mask, counts,
                 w1, b1, w2, b2, *, num_classes):
    N, T, H = x.shape
    S, R_max, _ = frame_idx.shape
    D_max = T * H
    C_pad = w2.shape[-1]

    # One fused gather of every sampled relation of every scale.
    g = jnp.take(x, frame_idx.reshape(-1), axis=1)               # (N, S*R*T, H)
    g = g.reshape(N, S, R_max, T, H) * frame_mask[None, :, :, :, None]
    acts = jnp.transpose(g, (1, 2, 0, 3, 4)).reshape(S, R_max, N, D_max)

    # Relation validity mask, expanded to the kernel's (R_max*N, C_pad) row layout.
    rmask_full = jnp.broadcast_to(
        rel_mask[:, :, None, None], (S, R_max, N, C_pad)
    ).reshape(S, R_max * N, C_pad)

    # Hoisted second-layer bias: each sampled relation of scale s adds b2[s].
    b2_total = jnp.sum(counts[:, None, None] * b2, axis=0)       # (1, C_pad)

    out_pad = _fused_scales_pallas(acts, w1, b1, w2, rmask_full, b2_total)
    return out_pad[:, :num_classes]


# ---------------------------------------------------------------------------
# Module: parameter setup + forward (matches the PyTorch reference semantics)
# ---------------------------------------------------------------------------
class RelationModuleMultiScalePallas:
    def __init__(self, hidden_dim, num_segments, num_classes, key):
        self.hidden_dim = hidden_dim
        self.num_segments = num_segments
        self.num_classes = num_classes
        self.bottleneck_dim = _BOTTLENECK
        self.scales = list(range(num_segments, 1, -1))

        self.relations_scales = []
        self.subsample_scales = []
        max_subsample = 3
        for scale in self.scales:
            rels = list(itertools.combinations(range(num_segments), scale))
            self.relations_scales.append(rels)
            self.subsample_scales.append(min(max_subsample, len(rels)))
        assert len(self.relations_scales[0]) == 1

        self.r_max = max(self.subsample_scales)
        self.d_max = num_segments * hidden_dim
        self.c_pad = ((num_classes + 127) // 128) * 128  # lane-dense output columns
        self.c_pad = max(self.c_pad, 128)

        S = len(self.scales)
        w1_stack = np.zeros((S, self.d_max, self.bottleneck_dim), np.float32)
        b1_stack = np.zeros((S, 1, self.bottleneck_dim), np.float32)
        w2_stack = np.zeros((S, self.bottleneck_dim, self.c_pad), np.float32)
        b2_stack = np.zeros((S, 1, self.c_pad), np.float32)

        # Deterministic kaiming-uniform-like init (torch nn.Linear default bounds),
        # written into zero-padded stacked buffers (padded rows/cols stay exactly 0).
        for i, scale in enumerate(self.scales):
            d_in = scale * hidden_dim
            k = jax.random.fold_in(key, i)
            k1, k2, k3, k4 = jax.random.split(k, 4)
            bnd1 = 1.0 / np.sqrt(d_in)
            bnd2 = 1.0 / np.sqrt(self.bottleneck_dim)
            w1_stack[i, :d_in, :] = np.asarray(jax.random.uniform(
                k1, (d_in, self.bottleneck_dim), jnp.float32, -bnd1, bnd1))
            b1_stack[i, 0, :] = np.asarray(jax.random.uniform(
                k2, (self.bottleneck_dim,), jnp.float32, -bnd1, bnd1))
            w2_stack[i, :, :num_classes] = np.asarray(jax.random.uniform(
                k3, (self.bottleneck_dim, num_classes), jnp.float32, -bnd2, bnd2))
            b2_stack[i, 0, :num_classes] = np.asarray(jax.random.uniform(
                k4, (num_classes,), jnp.float32, -bnd2, bnd2))

        # bf16 weights feed the MXU (v6e/v7x); biases + accumulation stay f32.
        self.w1_stack = jnp.asarray(w1_stack, jnp.bfloat16)
        self.b1_stack = jnp.asarray(b1_stack, jnp.float32)
        self.w2_stack = jnp.asarray(w2_stack, jnp.bfloat16)
        self.b2_stack = jnp.asarray(b2_stack, jnp.float32)

    # Host-side relation subsampling (mirrors np.random.choice in the reference forward).
    def sample_relations(self, np_rng):
        S, T, R = len(self.scales), self.num_segments, self.r_max
        frame_idx = np.zeros((S, R, T), np.int32)
        frame_mask = np.zeros((S, R, T), np.float32)
        rel_mask = np.zeros((S, R), np.float32)
        counts = np.zeros((S,), np.float32)
        for sid, scale in enumerate(self.scales):
            rels = self.relations_scales[sid]
            if sid == 0:
                chosen = [rels[0]]  # the single full-scale relation
            else:
                idx = np_rng.choice(len(rels), self.subsample_scales[sid],
                                    replace=False)
                chosen = [rels[int(i)] for i in idx]
            counts[sid] = float(len(chosen))
            for r, rel in enumerate(chosen):
                frame_idx[sid, r, :scale] = np.asarray(rel, np.int32)
                frame_mask[sid, r, :scale] = 1.0
                rel_mask[sid, r] = 1.0
        return frame_idx, frame_mask, rel_mask, counts

    def forward(self, x, np_rng=None, sample=None):
        """x: (N, T, H) float32."""
        if sample is None:
            sample = self.sample_relations(np_rng)
        frame_idx, frame_mask, rel_mask, counts = sample
        return _trn_forward(
            x,
            jnp.asarray(frame_idx), jnp.asarray(frame_mask),
            jnp.asarray(rel_mask), jnp.asarray(counts),
            self.w1_stack, self.b1_stack, self.w2_stack, self.b2_stack,
            num_classes=self.num_classes)

    # Plain-JAX reference using the same sampled relations and the same bf16
    # quantization points, for an in-script correctness check of the kernel path.
    def reference(self, x, sample):
        frame_idx, frame_mask, rel_mask, counts = sample
        N = x.shape[0]
        H = self.hidden_dim
        out = jnp.zeros((N, self.num_classes), jnp.float32)
        for sid, scale in enumerate(self.scales):
            d_in = scale * H
            w1 = self.w1_stack[sid, :d_in, :].astype(jnp.float32)
            b1 = self.b1_stack[sid, 0, :]
            w2 = self.w2_stack[sid, :, :self.num_classes].astype(jnp.float32)
            b2 = self.b2_stack[sid, 0, :self.num_classes]
            for r in range(int(counts[sid])):
                frames = frame_idx[sid, r, :scale]
                a = x[:, frames, :].reshape(N, d_in)
                a = jnp.maximum(a, 0.0).astype(jnp.bfloat16).astype(jnp.float32)
                h = jnp.maximum(a @ w1 + b1, 0.0)
                h = h.astype(jnp.bfloat16).astype(jnp.float32)
                out = out + (h @ w2 + b2)
        return out


if __name__ == "__main__":
    hidden_dim = 32
    num_segments = 8
    num_classes = 16
    batch = 2

    key = jax.random.PRNGKey(0)
    module = RelationModuleMultiScalePallas(hidden_dim, num_segments,
                                            num_classes, key)

    x = jax.random.normal(jax.random.fold_in(key, 1234),
                          (batch, num_segments, hidden_dim), jnp.float32)

    np_rng = np.random.default_rng(0)          # deterministic relation subsampling
    sample = module.sample_relations(np_rng)

    out = module.forward(x, sample=sample)
    out = jax.block_until_ready(out)
    assert out.shape == (batch, num_classes)
    assert bool(jnp.all(jnp.isfinite(out)))

    # Correctness check against a plain-JAX reference with identical sampling.
    ref = jax.block_until_ready(module.reference(x, sample))
    max_err = float(jnp.max(jnp.abs(out - ref)))
    assert max_err < 2e-2, f"kernel vs reference mismatch: {max_err}"

    print("KERNEL_OK")
</pallas_src>

<mosaic_0001>
module attributes {stable_mosaic.version = 11 : i64} {
  func.func @_fused_trn_kernel(%arg0: i32, %arg1: memref<1x3x2x256xf32, #tpu.memory_space<vmem>>, %arg2: memref<1x256x256xbf16, #tpu.memory_space<vmem>>, %arg3: memref<1x1x256xf32, #tpu.memory_space<vmem>>, %arg4: memref<1x256x128xbf16, #tpu.memory_space<vmem>>, %arg5: memref<1x6x128xf32, #tpu.memory_space<vmem>>, %arg6: memref<1x128xf32, #tpu.memory_space<vmem>>, %arg7: memref<2x128xf32, #tpu.memory_space<vmem>>) attributes {dimension_semantics = [#tpu.dimension_semantics<arbitrary>], iteration_bounds = array<i64: 7>, scalar_prefetch = 0 : i64, scratch_operands = 0 : i64, tpu.core_type = #tpu.core_type<tc>, window_params = [{transform_indices = @transform_0, window_bounds = array<i64: 1, 3, 2, 256>}, {transform_indices = @transform_1, window_bounds = array<i64: 1, 256, 256>}, {transform_indices = @transform_2, window_bounds = array<i64: 1, 1, 256>}, {transform_indices = @transform_3, window_bounds = array<i64: 1, 256, 128>}, {transform_indices = @transform_4, window_bounds = array<i64: 1, 6, 128>}, {pipeline_mode = #tpu.pipeline_mode<synchronous>, transform_indices = @transform_5, window_bounds = array<i64: 1, 128>}, {pipeline_mode = #tpu.pipeline_mode<synchronous>, transform_indices = @transform_6, window_bounds = array<i64: 2, 128>}]} {
    %c0_i32 = arith.constant 0 : i32
    %0 = arith.cmpi eq, %arg0, %c0_i32 : i32
    %1 = arith.extui %0 : i1 to i32
    %c0_i32_0 = arith.constant 0 : i32
    %2 = arith.cmpi ne, %1, %c0_i32_0 : i32
    scf.if %2 {
      %cst_25 = arith.constant 0.000000e+00 : f32
      %33 = vector.broadcast %cst_25 : f32 to vector<2x128xf32>
      %c0_26 = arith.constant 0 : index
      %c0_27 = arith.constant 0 : index
      %34 = vector.load %arg7[%c0_26, %c0_27] : memref<2x128xf32, #tpu.memory_space<vmem>>, vector<2x128xf32>
      tpu.vector_store %arg7[%c0_26, %c0_27], %33 {strides = array<i32>} : memref<2x128xf32, #tpu.memory_space<vmem>>, vector<2x128xf32>,
    } else {
    }
    %c0 = arith.constant 0 : index
    %c0_1 = arith.constant 0 : index
    %c0_2 = arith.constant 0 : index
    %c0_3 = arith.constant 0 : index
    %3 = vector.load %arg1[%c0, %c0_1, %c0_2, %c0_3] : memref<1x3x2x256xf32, #tpu.memory_space<vmem>>, vector<1x3x2x256xf32>
    %4 = vector.shape_cast %3 : vector<1x3x2x256xf32> to vector<3x2x256xf32>
    %cst = arith.constant 0.000000e+00 : f32
    %5 = vector.broadcast %cst : f32 to vector<3x2x256xf32>
    %6 = arith.maximumf %4, %5 : vector<3x2x256xf32>
    %7 = vector.shape_cast %6 : vector<3x2x256xf32> to vector<6x256xf32>
    %8 = arith.truncf %7 : vector<6x256xf32> to vector<6x256xbf16>
    %c0_4 = arith.constant 0 : index
    %c0_5 = arith.constant 0 : index
    %c0_6 = arith.constant 0 : index
    %9 = vector.load %arg2[%c0_4, %c0_5, %c0_6] : memref<1x256x256xbf16, #tpu.memory_space<vmem>>, vector<1x256x256xbf16>
    %10 = vector.shape_cast %9 : vector<1x256x256xbf16> to vector<256x256xbf16>
    %cst_7 = arith.constant dense<0.000000e+00> : vector<6x256xf32>
    %11 = tpu.matmul %8, %10, %cst_7 {dimension_numbers = #tpu.dot_dimension_numbers<[1], [0], [0], [1], [0, 0, 1, 1], [], []>} : vector<6x256xbf16>, vector<256x256xbf16>, vector<6x256xf32> -> vector<6x256xf32>
    %c0_8 = arith.constant 0 : index
    %c0_9 = arith.constant 0 : index
    %c0_10 = arith.constant 0 : index
    %12 = vector.load %arg3[%c0_8, %c0_9, %c0_10] : memref<1x1x256xf32, #tpu.memory_space<vmem>>, vector<1x1x256xf32>
    %13 = vector.shape_cast %12 : vector<1x1x256xf32> to vector<1x256xf32>
    %14 = vector.broadcast %13 : vector<1x256xf32> to vector<6x256xf32>
    %15 = arith.addf %11, %14 : vector<6x256xf32>
    %cst_11 = arith.constant 0.000000e+00 : f32
    %16 = vector.broadcast %cst_11 : f32 to vector<6x256xf32>
    %17 = arith.maximumf %15, %16 : vector<6x256xf32>
    %18 = arith.truncf %17 : vector<6x256xf32> to vector<6x256xbf16>
    %c0_12 = arith.constant 0 : index
    %c0_13 = arith.constant 0 : index
    %c0_14 = arith.constant 0 : index
    %19 = vector.load %arg4[%c0_12, %c0_13, %c0_14] : memref<1x256x128xbf16, #tpu.memory_space<vmem>>, vector<1x256x128xbf16>
    %20 = vector.shape_cast %19 : vector<1x256x128xbf16> to vector<256x128xbf16>
    %cst_15 = arith.constant dense<0.000000e+00> : vector<6x128xf32>
    %21 = tpu.matmul %18, %20, %cst_15 {dimension_numbers = #tpu.dot_dimension_numbers<[1], [0], [0], [1], [0, 0, 1, 1], [], []>} : vector<6x256xbf16>, vector<256x128xbf16>, vector<6x128xf32> -> vector<6x128xf32>
    %c0_16 = arith.constant 0 : index
    %c0_17 = arith.constant 0 : index
    %c0_18 = arith.constant 0 : index
    %22 = vector.load %arg5[%c0_16, %c0_17, %c0_18] : memref<1x6x128xf32, #tpu.memory_space<vmem>>, vector<1x6x128xf32>
    %23 = vector.shape_cast %22 : vector<1x6x128xf32> to vector<6x128xf32>
    %24 = arith.mulf %21, %23 : vector<6x128xf32>
    %c0_19 = arith.constant 0 : index
    %c0_20 = arith.constant 0 : index
    %25 = vector.load %arg7[%c0_19, %c0_20] : memref<2x128xf32, #tpu.memory_space<vmem>>, vector<2x128xf32>
    %26 = vector.shape_cast %24 : vector<6x128xf32> to vector<3x2x128xf32>
    %cst_21 = arith.constant dense<0.000000e+00> : vector<2x128xf32>
    %27 = vector.multi_reduction <add>, %26, %cst_21 [0] : vector<3x2x128xf32> to vector<2x128xf32>
    %28 = arith.addf %25, %27 : vector<2x128xf32>
    %c0_22 = arith.constant 0 : index
    %c0_23 = arith.constant 0 : index
    %29 = vector.load %arg7[%c0_22, %c0_23] : memref<2x128xf32, #tpu.memory_space<vmem>>, vector<2x128xf32>
    tpu.vector_store %arg7[%c0_22, %c0_23], %28 {strides = array<i32>} : memref<2x128xf32, #tpu.memory_space<vmem>>, vector<2x128xf32>,
    %c6_i32 = arith.constant 6 : i32
    %30 = arith.cmpi eq, %arg0, %c6_i32 : i32
    %31 = arith.extui %30 : i1 to i32
    %c0_i32_24 = arith.constant 0 : i32
    %32 = arith.cmpi ne, %31, %c0_i32_24 : i32
    scf.if %32 {
      %c0_25 = arith.constant 0 : index
      %c0_26 = arith.constant 0 : index
      %33 = vector.load %arg7[%c0_25, %c0_26] : memref<2x128xf32, #tpu.memory_space<vmem>>, vector<2x128xf32>
      %c0_27 = arith.constant 0 : index
      %c0_28 = arith.constant 0 : index
      %34 = vector.load %arg6[%c0_27, %c0_28] : memref<1x128xf32, #tpu.memory_space<vmem>>, vector<1x128xf32>
      %35 = vector.broadcast %34 : vector<1x128xf32> to vector<2x128xf32>
      %36 = arith.addf %33, %35 : vector<2x128xf32>
      %c0_29 = arith.constant 0 : index
      %c0_30 = arith.constant 0 : index
      %37 = vector.load %arg7[%c0_29, %c0_30] : memref<2x128xf32, #tpu.memory_space<vmem>>, vector<2x128xf32>
      tpu.vector_store %arg7[%c0_29, %c0_30], %36 {strides = array<i32>} : memref<2x128xf32, #tpu.memory_space<vmem>>, vector<2x128xf32>,
    } else {
    }
    return
  }
  func.func @transform_0(%arg0: i32) -> (i32, i32, i32, i32) {
    %c0_i32 = arith.constant 0 : i32
    %c0_i32_0 = arith.constant 0 : i32
    %c0_i32_1 = arith.constant 0 : i32
    %c0_i32_2 = arith.constant 0 : i32
    return %arg0, %c0_i32, %c0_i32_0, %c0_i32_1 : i32, i32, i32, i32
  }
  func.func @transform_1(%arg0: i32) -> (i32, i32, i32) {
    %c0_i32 = arith.constant 0 : i32
    %c0_i32_0 = arith.constant 0 : i32
    %c0_i32_1 = arith.constant 0 : i32
    return %arg0, %c0_i32, %c0_i32_0 : i32, i32, i32
  }
  func.func @transform_2(%arg0: i32) -> (i32, i32, i32) {
    %c0_i32 = arith.constant 0 : i32
    %c0_i32_0 = arith.constant 0 : i32
    %c0_i32_1 = arith.constant 0 : i32
    return %arg0, %c0_i32, %c0_i32_0 : i32, i32, i32
  }
  func.func @transform_3(%arg0: i32) -> (i32, i32, i32) {
    %c0_i32 = arith.constant 0 : i32
    %c0_i32_0 = arith.constant 0 : i32
    %c0_i32_1 = arith.constant 0 : i32
    return %arg0, %c0_i32, %c0_i32_0 : i32, i32, i32
  }
  func.func @transform_4(%arg0: i32) -> (i32, i32, i32) {
    %c0_i32 = arith.constant 0 : i32
    %c0_i32_0 = arith.constant 0 : i32
    %c0_i32_1 = arith.constant 0 : i32
    return %arg0, %c0_i32, %c0_i32_0 : i32, i32, i32
  }
  func.func @transform_5(%arg0: i32) -> (i32, i32) {
    %c0_i32 = arith.constant 0 : i32
    %c0_i32_0 = arith.constant 0 : i32
    %c0_i32_1 = arith.constant 0 : i32
    return %c0_i32, %c0_i32_0 : i32, i32
  }
  func.func @transform_6(%arg0: i32) -> (i32, i32) {
    %c0_i32 = arith.constant 0 : i32
    %c0_i32_0 = arith.constant 0 : i32
    %c0_i32_1 = arith.constant 0 : i32
    return %c0_i32, %c0_i32_0 : i32, i32
  }
}

</mosaic_0001>

<llo_original>
// kernel: _trn_forward.1
$region0: #{_trn_forward.1}
  #allocation0 [shape = 'u32[]', space=smem, size = 0x4, offset = 0x4, fixed_abs, tag = 'smem constant byte address 0x4 - core index']
  #allocation1 [shape = 'u32[144,128]{1,0:T(1,128)}', space=vmem, size = 0x12000, scoped, tag = 'internal scratch']
  %s0 = inlined_call_operand.vmem [shape: f32[7,3,2,256], index: 0, kind: input, shape index: {}]
  %s1 = inlined_call_operand.vmem [shape: bf16[7,256,256], index: 1, kind: input, shape index: {}]
  %s2 = inlined_call_operand.vmem [shape: f32[7,1,256], index: 2, kind: input, shape index: {}]
  %s3 = inlined_call_operand.hbm [shape: bf16[7,256,128], index: 3, kind: input, shape index: {}]
  %s4 = inlined_call_operand.vmem [shape: f32[7,6,128], index: 4, kind: input, shape index: {}]
  %s5 = inlined_call_operand.vmem [shape: f32[1,128], index: 5, kind: input, shape index: {}]
  %s6 = inlined_call_operand.hbm [shape: f32[2,128], index: 6, kind: output, shape index: {}]
  %s7 = sld [smem:[#allocation0]]
  $region69: #{_trn_forward.1} parent=0
    _
  %s9 = ssub.s32 1, %s7
  %s10 = scalar_select 0, %s9, %s7
  $region1: #{_trn_forward.1} parent=0
    #allocation2 [shape = 'u8[131072]{0}', space=vmem, size = 0x20000, scoped, tag = 'input window, operand 3']
    #allocation3 [shape = 's32[2]{0}', space=sflag, size = 0x8, scoped, tag = 'scoped memory for _trn_forward.1']
    #allocation4 [shape = 's32[2]{0}', space=sflag, size = 0x8, scoped, tag = 'scoped memory for _trn_forward.1']
    #allocation5 [shape = 'u8[1024]{0}', space=vmem, size = 0x400, scoped, tag = 'output window, operand 0, single buffered']
    %11 = vsyncpa [#allocation3], 0
    %s12 = scalar_lea.sflag [#allocation3], 1
    %13 = vsyncpa %s12, 0
    %14 = vsyncpa [#allocation4], 0
    loop: start=0, step=1, limit=9
    $region2: #{_trn_forward.1} parent=1 // loop_pre_header
      _
    $region3: #{_trn_forward.1} parent=1 // loop_header
      %s16 = sphi 0, %s20
      %p17 = scmp.ge.s32.totalorder %s16, 9
      %s26 = sphi 0, %s28
      %s29 = sphi 0, %s26
      %s30 = sphi 0, %s29
      %s46 = sphi 0, %s30
      %s52 = sphi 0, %s54
      %s55 = sphi 0, %s52
      %s56 = sphi 0, %s55
      %s72 = sphi 0, %s56
      %s78 = sphi 0, %s80
      %s81 = sphi 0, %s78
      %s82 = sphi 0, %s81
      %s98 = sphi 0, %s82
      %s104 = sphi 0, %s106
      %s107 = sphi 0, %s104
      %s108 = sphi 0, %s107
      %s124 = sphi 0, %s108
      %s130 = sphi 0, %s132
      %s133 = sphi 0, %s130
      %s134 = sphi 0, %s133
      %s150 = sphi 0, %s134
      %s154 = sphi 0, %s154
      %s156 = sphi 0, %s154
      %s157 = sphi 0, %s156
      %s171 = sphi 0, %s157
      %s175 = sphi 0, %s175
      %s177 = sphi 0, %s175
      %s178 = sphi 0, %s177
      %s192 = sphi 0, %s178
    $region4: #{_trn_forward.1} parent=1 // loop_header_branch
      %19 = sbr.rel (%p17) target = $region8
    $region5: #{_trn_forward.1} parent=1 // loop_body
      %s21 = ssub.s32 %s16, 1
      %s22 = ssub.s32 %s16, 2
      %s23 = sadd.s32 %s16, 1
      %s24 = ssub.s32 %s16, %s23
      %p25 = scmp.eq.s32.totalorder %s24, 0
      %s27 = sadd.s32 %s26, 1
      %s28 = scalar_select %p25, %s26, %s27
      %p31 = pneg %p25
      %p32 = scmp.eq.s32.totalorder %s16, 6
      %p33 = por %p31, %p32
      %p34 = scmp.ne.s32.totalorder %s26, %s29
      %p35 = scmp.eq.s32.totalorder %s16, 0
      %p36 = por %p34, %p35
      %p37 = scmp.ne.s32.totalorder %s26, %s29
      %p38 = scmp.eq.s32.totalorder %s21, 6
      %p39 = por %p37, %p38
      %p40 = scmp.ne.s32.totalorder %s29, %s30
      %p41 = scmp.eq.s32.totalorder %s21, 0
      %p42 = por %p40, %p41
      %p43 = scmp.ne.s32.totalorder %s29, %s30
      %p44 = scmp.eq.s32.totalorder %s22, 6
      %p45 = por %p43, %p44
      %p47 = scmp.ne.s32.totalorder %s30, %s46
      %p48 = scmp.eq.s32.totalorder %s22, 0
      %p49 = por %p47, %p48
      %s50 = ssub.s32 %s16, %s23
      %p51 = scmp.eq.s32.totalorder %s50, 0
      %s53 = sadd.s32 %s52, 1
      %s54 = scalar_select %p51, %s52, %s53
      %p57 = pneg %p51
      %p58 = scmp.eq.s32.totalorder %s16, 6
      %p59 = por %p57, %p58
      %p60 = scmp.ne.s32.totalorder %s52, %s55
      %p61 = scmp.eq.s32.totalorder %s16, 0
      %p62 = por %p60, %p61
      %p63 = scmp.ne.s32.totalorder %s52, %s55
      %p64 = scmp.eq.s32.totalorder %s21, 6
      %p65 = por %p63, %p64
      %p66 = scmp.ne.s32.totalorder %s55, %s56
      %p67 = scmp.eq.s32.totalorder %s21, 0
      %p68 = por %p66, %p67
      %p69 = scmp.ne.s32.totalorder %s55, %s56
      %p70 = scmp.eq.s32.totalorder %s22, 6
      %p71 = por %p69, %p70
      %p73 = scmp.ne.s32.totalorder %s56, %s72
      %p74 = scmp.eq.s32.totalorder %s22, 0
      %p75 = por %p73, %p74
      %s76 = ssub.s32 %s16, %s23
      %p77 = scmp.eq.s32.totalorder %s76, 0
      %s79 = sadd.s32 %s78, 1
      %s80 = scalar_select %p77, %s78, %s79
      %p83 = pneg %p77
      %p84 = scmp.eq.s32.totalorder %s16, 6
      %p85 = por %p83, %p84
      %p86 = scmp.ne.s32.totalorder %s78, %s81
      %p87 = scmp.eq.s32.totalorder %s16, 0
      %p88 = por %p86, %p87
      %p89 = scmp.ne.s32.totalorder %s78, %s81
      %p90 = scmp.eq.s32.totalorder %s21, 6
      %p91 = por %p89, %p90
      %p92 = scmp.ne.s32.totalorder %s81, %s82
      %p93 = scmp.eq.s32.totalorder %s21, 0
      %p94 = por %p92, %p93
      %p95 = scmp.ne.s32.totalorder %s81, %s82
      %p96 = scmp.eq.s32.totalorder %s22, 6
      %p97 = por %p95, %p96
      %p99 = scmp.ne.s32.totalorder %s82, %s98
      %p100 = scmp.eq.s32.totalorder %s22, 0
      %p101 = por %p99, %p100
      %s102 = ssub.s32 %s16, %s23
      %p103 = scmp.eq.s32.totalorder %s102, 0
      %s105 = sadd.s32 %s104, 1
      %s106 = scalar_select %p103, %s104, %s105
      %p109 = pneg %p103
      %p110 = scmp.eq.s32.totalorder %s16, 6
      %p111 = por %p109, %p110
      %p112 = scmp.ne.s32.totalorder %s104, %s107
      %p113 = scmp.eq.s32.totalorder %s16, 0
      %p114 = por %p112, %p113
      %p115 = scmp.ne.s32.totalorder %s104, %s107
      %p116 = scmp.eq.s32.totalorder %s21, 6
      %p117 = por %p115, %p116
      %p118 = scmp.ne.s32.totalorder %s107, %s108
      %p119 = scmp.eq.s32.totalorder %s21, 0
      %p120 = por %p118, %p119
      %p121 = scmp.ne.s32.totalorder %s107, %s108
      %p122 = scmp.eq.s32.totalorder %s22, 6
      %p123 = por %p121, %p122
      %p125 = scmp.ne.s32.totalorder %s108, %s124
      %p126 = scmp.eq.s32.totalorder %s22, 0
      %p127 = por %p125, %p126
      %s128 = ssub.s32 %s16, %s23
      %p129 = scmp.eq.s32.totalorder %s128, 0
      %s131 = sadd.s32 %s130, 1
      %s132 = scalar_select %p129, %s130, %s131
      %p135 = pneg %p129
      %p136 = scmp.eq.s32.totalorder %s16, 6
      %p137 = por %p135, %p136
      %p138 = scmp.ne.s32.totalorder %s130, %s133
      %p139 = scmp.eq.s32.totalorder %s16, 0
      %p140 = por %p138, %p139
      %p141 = scmp.ne.s32.totalorder %s130, %s133
      %p142 = scmp.eq.s32.totalorder %s21, 6
      %p143 = por %p141, %p142
      %p144 = scmp.ne.s32.totalorder %s133, %s134
      %p145 = scmp.eq.s32.totalorder %s21, 0
      %p146 = por %p144, %p145
      %p147 = scmp.ne.s32.totalorder %s133, %s134
      %p148 = scmp.eq.s32.totalorder %s22, 6
      %p149 = por %p147, %p148
      %p151 = scmp.ne.s32.totalorder %s134, %s150
      %p152 = scmp.eq.s32.totalorder %s22, 0
      %p153 = por %p151, %p152
      %s155 = sadd.s32 %s154, 1
      %p158 = scmp.eq.s32.totalorder %s16, 6
      %p159 = scmp.ne.s32.totalorder %s154, %s156
      %p160 = scmp.eq.s32.totalorder %s16, 0
      %p161 = por %p159, %p160
      %p162 = scmp.ne.s32.totalorder %s154, %s156
      %p163 = scmp.eq.s32.totalorder %s21, 6
      %p164 = por %p162, %p163
      %p165 = scmp.ne.s32.totalorder %s156, %s157
      %p166 = scmp.eq.s32.totalorder %s21, 0
      %p167 = por %p165, %p166
      %p168 = scmp.ne.s32.totalorder %s156, %s157
      %p169 = scmp.eq.s32.totalorder %s22, 6
      %p170 = por %p168, %p169
      %p172 = scmp.ne.s32.totalorder %s157, %s171
      %p173 = scmp.eq.s32.totalorder %s22, 0
      %p174 = por %p172, %p173
      %s176 = sadd.s32 %s175, 1
      %p179 = scmp.eq.s32.totalorder %s16, 6
      %p180 = scmp.ne.s32.totalorder %s175, %s177
      %p181 = scmp.eq.s32.totalorder %s16, 0
      %p182 = por %p180, %p181
      %p183 = scmp.ne.s32.totalorder %s175, %s177
      %p184 = scmp.eq.s32.totalorder %s21, 6
      %p185 = por %p183, %p184
      %p186 = scmp.ne.s32.totalorder %s177, %s178
      %p187 = scmp.eq.s32.totalorder %s21, 0
      %p188 = por %p186, %p187
      %p189 = scmp.ne.s32.totalorder %s177, %s178
      %p190 = scmp.eq.s32.totalorder %s22, 6
      %p191 = por %p189, %p190
      %p193 = scmp.ne.s32.totalorder %s178, %s192
      %p194 = scmp.eq.s32.totalorder %s22, 0
      %p195 = por %p193, %p194
      %p196 = scmp.le.s32.totalorder 1, %s16
      %p197 = scmp.lt.s32.totalorder %s16, 8
      %p198 = pnand %p196, %p197
      %p199 = pneg %p198
      // Predicated region
      $region9: #{_trn_forward.1} parent=5 // pred_check
        _
      $region10: #{_trn_forward.1} parent=5 // pred_check_branch
        %201 = sbr.rel (%p198) target = $region12
      $region11: #{_trn_forward.1} parent=5 // pred_region
        %s202 = ssub.s32 %s16, 1
        // Predicated region
        $region13: #{_trn_forward.1} parent=11 // pred_check
          %p203 = pneg %p167
        $region14: #{_trn_forward.1} parent=11 // pred_check_branch
          %205 = sbr.rel (%p203) target = $region16
        $region15: #{_trn_forward.1} parent=11 // pred_region
          _
        $region16: #{_trn_forward.1} parent=11 // pred_fallthru
          _
      $region12: #{_trn_forward.1} parent=5 // pred_fallthru
        _
      %p206 = scmp.lt.s32.totalorder %s16, 7
      // Predicated region
      $region17: #{_trn_forward.1} parent=5 // pred_check
        %p207 = pneg %p206
      $region18: #{_trn_forward.1} parent=5 // pred_check_branch
        %209 = sbr.rel (%p207) target = $region20
      $region19: #{_trn_forward.1} parent=5 // pred_region
        // Predicated region
        $region21: #{_trn_forward.1} parent=19 // pred_check
          %p210 = pneg %p36
        $region22: #{_trn_forward.1} parent=19 // pred_check_branch
          %212 = sbr.rel (%p210) target = $region24
        $region23: #{_trn_forward.1} parent=19 // pred_region
          %p213 = scmp.lt.s32.totalorder %s16, 6
          %s214 = scalar_select %p213, %s16, 6
          %s215 = smul.addr %s214, 6
          %s216 = smul.addr %s215, 2
          %s217 = scalar_lea.vmem %s0, %s216
        $region24: #{_trn_forward.1} parent=19 // pred_fallthru
          _
        // Predicated region
        $region25: #{_trn_forward.1} parent=19 // pred_check
          %p218 = pneg %p62
        $region26: #{_trn_forward.1} parent=19 // pred_check_branch
          %220 = sbr.rel (%p218) target = $region28
        $region27: #{_trn_forward.1} parent=19 // pred_region
          %p221 = scmp.lt.s32.totalorder %s16, 6
          %s222 = scalar_select %p221, %s16, 6
          %s223 = smul.addr %s222, 64
          %s224 = smul.addr %s223, 4
          %s225 = scalar_lea.vmem %s1, %s224
        $region28: #{_trn_forward.1} parent=19 // pred_fallthru
          _
        // Predicated region
        $region29: #{_trn_forward.1} parent=19 // pred_check
          %p226 = pneg %p88
        $region30: #{_trn_forward.1} parent=19 // pred_check_branch
          %228 = sbr.rel (%p226) target = $region32
        $region31: #{_trn_forward.1} parent=19 // pred_region
          %p229 = scmp.lt.s32.totalorder %s16, 6
          %s230 = scalar_select %p229, %s16, 6
          %s231 = smul.addr %s230, 2
          %s232 = scalar_lea.vmem %s2, %s231
        $region32: #{_trn_forward.1} parent=19 // pred_fallthru
          _
        // Predicated region
        $region33: #{_trn_forward.1} parent=19 // pred_check
          %p233 = pneg %p114
        $region34: #{_trn_forward.1} parent=19 // pred_check_branch
          %235 = sbr.rel (%p233) target = $region36
        $region35: #{_trn_forward.1} parent=19 // pred_region
          %s236 = sand.u32 %s104, 1
          %s237 = scalar_lea.sflag [#allocation3], %s236
          %s238 = sand.u32 %s104, 1
          %s239 = smul.addr %s238, 128
          %s240 = scalar_lea.vmem [#allocation2], %s239
          %s242 = ssub.s32 2048, 2048
          %243 = vsyncadd %s237, %s242
          %s244 = smul.addr %s16, 32
          %s245 = smul.addr %s244, 64
          %s246 = scalar_lea.hbm %s3, %s245
          %s247 = sshll.u32 %s240, 4
          %s248 = int_to_ptr.vmem [resolvable:$true] %s247
          %253 = dma.hbm_to_vmem [thread:$0]  %s246, 2048, %s248, %s237, 64, 64, 4
        $region36: #{_trn_forward.1} parent=19 // pred_fallthru
          _
        // Predicated region
        $region37: #{_trn_forward.1} parent=19 // pred_check
          %p254 = pneg %p140
        $region38: #{_trn_forward.1} parent=19 // pred_check_branch
          %256 = sbr.rel (%p254) target = $region40
        $region39: #{_trn_forward.1} parent=19 // pred_region
          %p257 = scmp.lt.s32.totalorder %s16, 6
          %s258 = scalar_select %p257, %s16, 6
          %s259 = smul.addr %s258, 8
          %s260 = scalar_lea.vmem %s4, %s259
        $region40: #{_trn_forward.1} parent=19 // pred_fallthru
          _
      $region20: #{_trn_forward.1} parent=5 // pred_fallthru
        _
      %p261 = scmp.le.s32.totalorder 1, %s16
      %p262 = scmp.lt.s32.totalorder %s16, 8
      %p263 = pnand %p261, %p262
      %p264 = pneg %p263
      // Predicated region
      $region41: #{_trn_forward.1} parent=5 // pred_check
        _
      $region42: #{_trn_forward.1} parent=5 // pred_check_branch
        %266 = sbr.rel (%p263) target = $region44
      $region43: #{_trn_forward.1} parent=5 // pred_region
        %s267 = ssub.s32 %s16, 1
        %s268 = sand.u32 %s107, 1
        %s269 = scalar_lea.sflag [#allocation3], %s268
        %s270 = sand.u32 %s107, 1
        %s271 = smul.addr %s270, 128
        %s272 = scalar_lea.vmem [#allocation2], %s271
        // Predicated region
        $region45: #{_trn_forward.1} parent=43 // pred_check
          %p273 = pneg %p120
        $region46: #{_trn_forward.1} parent=43 // pred_check_branch
          %275 = sbr.rel (%p273) target = $region48
        $region47: #{_trn_forward.1} parent=43 // pred_region
          %276 = dma.done %s269, 2048
        $region48: #{_trn_forward.1} parent=43 // pred_fallthru
          _
        %p277 = scmp.lt.s32.totalorder %s21, 6
        %s278 = scalar_select %p277, %s21, 6
        %s279 = smul.addr %s278, 6
        %s280 = smul.addr %s279, 2
        %s281 = scalar_lea.vmem %s0, %s280
        %p282 = pneg %p42
        %p283 = pneg %p39
        %p284 = scmp.lt.s32.totalorder %s21, 6
        %s285 = scalar_select %p284, %s21, 6
        %s286 = smul.addr %s285, 64
        %s287 = smul.addr %s286, 4
        %s288 = scalar_lea.vmem %s1, %s287
        %p289 = pneg %p68
        %p290 = pneg %p65
        %p291 = scmp.lt.s32.totalorder %s21, 6
        %s292 = scalar_select %p291, %s21, 6
        %s293 = smul.addr %s292, 2
        %s294 = scalar_lea.vmem %s2, %s293
        %p295 = pneg %p94
        %p296 = pneg %p91
        %s297 = sand.u32 %s107, 1
        %s298 = scalar_lea.sflag [#allocation3], %s297
        %s299 = sand.u32 %s107, 1
        %s300 = smul.addr %s299, 128
        %s301 = scalar_lea.vmem [#allocation2], %s300
        %p302 = pneg %p120
        %p303 = pneg %p117
        %p304 = scmp.lt.s32.totalorder %s21, 6
        %s305 = scalar_select %p304, %s21, 6
        %s306 = smul.addr %s305, 8
        %s307 = scalar_lea.vmem %s4, %s306
        %p308 = pneg %p146
        %p309 = pneg %p143
        %p310 = pneg %p167
        %p311 = pneg %p164
        %p312 = pneg %p188
        %p313 = pneg %p185
        %p314 = scmp.lt.s32.totalorder %s21, 6
        %s315 = scalar_select %p314, %s21, 6
        %s316 = smul.addr %s315, 6
        %s317 = smul.addr %s316, 2
        %s318 = scalar_lea.vmem %s0, %s317
        %p319 = scmp.lt.s32.totalorder %s21, 6
        %s320 = scalar_select %p319, %s21, 6
        %s321 = smul.addr %s320, 64
        %s322 = smul.addr %s321, 4
        %s323 = scalar_lea.vmem %s1, %s322
        %p324 = scmp.lt.s32.totalorder %s21, 6
        %s325 = scalar_select %p324, %s21, 6
        %s326 = smul.addr %s325, 2
        %s327 = scalar_lea.vmem %s2, %s326
        %p328 = scmp.lt.s32.totalorder %s21, 6
        %s329 = scalar_select %p328, %s21, 6
        %s330 = smul.addr %s329, 8
        %s331 = scalar_lea.vmem %s4, %s330
        %p333 = scmp.eq.s32.totalorder %s21, 0
        // Predicated region
        $region49: #{_trn_forward.1} parent=43 // pred_check
          %p334 = pneg %p333
        $region50: #{_trn_forward.1} parent=43 // pred_check_branch
          %336 = sbr.rel (%p334) target = $region52
        $region51: #{_trn_forward.1} parent=43 // pred_region
          %337 = vst [vmem:[#allocation5] sm:$0x3] 0.0
        $region52: #{_trn_forward.1} parent=43 // pred_fallthru
          _
        %v338 = vld [vmem:[%s318] sm:$0xf]
        %v339 = vld [vmem:[%s318 + $0x4] sm:$0xf]
        %v340 = vld [vmem:[%s318 + $0x8] sm:$0xf]
        %v341 = vmax.f32 %v338, 0.0
        %v342 = vmax.f32 %v339, 0.0
        %v343 = vmax.f32 %v340, 0.0
        %v347 = vcombine.low %v341, %v342
        %v349 = vunpack.c.l.s4 1983009808
        %v350 = vunpack.c.0.s8 %v349
        %v351 = vlaneseq
        %v352 = vshrl.u32 %v351, 7
        %v353 = vsub.s32 %v350, %v352
        %v354 = vrot.slane %v347, %v353
        %v356 = vunpack.c.l.s4 1983009808
        %v357 = vunpack.c.0.s8 %v356
        %v358 = vlaneseq
        %v359 = vshrl.u32 %v358, 7
        %v360 = vsub.s32 %v357, %v359
        %v361 = vrot.slane %v343, %v360
        %v362 = vcombine.low %v354, %v361
        %v363 = vcombine.high %v354, %v361
        %v366 = vpack.c.bf16 %v362, %v362
        %v367 = vpack.c.bf16 %v363, %v363
        %v368 = vld [vmem:[%s323] sm:$0xff]
        %v369 = vld [vmem:[%s323 + $0x8] sm:$0xff]
        %v370 = vld [vmem:[%s323 + $0x10] sm:$0xff]
        %v371 = vld [vmem:[%s323 + $0x18] sm:$0xff]
        %v372 = vld [vmem:[%s323 + $0x20] sm:$0xff]
        %v373 = vld [vmem:[%s323 + $0x28] sm:$0xff]
        %v374 = vld [vmem:[%s323 + $0x30] sm:$0xff]
        %v375 = vld [vmem:[%s323 + $0x38] sm:$0xff]
        %v376 = vld [vmem:[%s323 + $0x40] sm:$0xff]
        %v377 = vld [vmem:[%s323 + $0x48] sm:$0xff]
        %v378 = vld [vmem:[%s323 + $0x50] sm:$0xff]
        %v379 = vld [vmem:[%s323 + $0x58] sm:$0xff]
        %v380 = vld [vmem:[%s323 + $0x60] sm:$0xff]
        %v381 = vld [vmem:[%s323 + $0x68] sm:$0xff]
        %v382 = vld [vmem:[%s323 + $0x70] sm:$0xff]
        %v383 = vld [vmem:[%s323 + $0x78] sm:$0xff]
        %v384 = vld [vmem:[%s323 + $0x80] sm:$0xff]
        %v385 = vld [vmem:[%s323 + $0x88] sm:$0xff]
        %v386 = vld [vmem:[%s323 + $0x90] sm:$0xff]
        %v387 = vld [vmem:[%s323 + $0x98] sm:$0xff]
        %v388 = vld [vmem:[%s323 + $0xa0] sm:$0xff]
        %v389 = vld [vmem:[%s323 + $0xa8] sm:$0xff]
        %v390 = vld [vmem:[%s323 + $0xb0] sm:$0xff]
        %v391 = vld [vmem:[%s323 + $0xb8] sm:$0xff]
        %v392 = vld [vmem:[%s323 + $0xc0] sm:$0xff]
        %v393 = vld [vmem:[%s323 + $0xc8] sm:$0xff]
        %v394 = vld [vmem:[%s323 + $0xd0] sm:$0xff]
        %v395 = vld [vmem:[%s323 + $0xd8] sm:$0xff]
        %v396 = vld [vmem:[%s323 + $0xe0] sm:$0xff]
        %v397 = vld [vmem:[%s323 + $0xe8] sm:$0xff]
        %v398 = vld [vmem:[%s323 + $0xf0] sm:$0xff]
        %v399 = vld [vmem:[%s323 + $0xf8] sm:$0xff]
        %v400 = vld [vmem:[%s327] sm:$0x3]
        %v402 = vlaneseq
        %v403 = vshrl.u32 %v402, 7
        %v404 = vsub.s32 0, %v403
        %v405 = vrot.slane %v400, %v404
        %v406 = vlaneseq
        %v407 = vshrl.u32 %v406, 7
        %v408 = vsub.s32 1, %v407
        %v409 = vrot.slane %v400, %v408
        %v444 = vunpack.c.l.b16 %v368
        %v445 = vunpack.c.h.b16 %v368
        %v446 = vunpack.c.l.b16 %v369
        %v447 = vunpack.c.h.b16 %v369
        %v448 = vunpack.c.l.b16 %v370
        %v449 = vunpack.c.h.b16 %v370
        %v450 = vunpack.c.l.b16 %v371
        %v451 = vunpack.c.h.b16 %v371
        %v452 = vunpack.c.l.b16 %v372
        %v453 = vunpack.c.h.b16 %v372
        %v454 = vunpack.c.l.b16 %v373
        %v455 = vunpack.c.h.b16 %v373
        %v456 = vunpack.c.l.b16 %v374
        %v457 = vunpack.c.h.b16 %v374
        %v458 = vunpack.c.l.b16 %v375
        %v459 = vunpack.c.h.b16 %v375
        %v460 = vunpack.c.l.b16 %v376
        %v461 = vunpack.c.h.b16 %v376
        %v462 = vunpack.c.l.b16 %v377
        %v463 = vunpack.c.h.b16 %v377
        %v464 = vunpack.c.l.b16 %v378
        %v465 = vunpack.c.h.b16 %v378
        %v466 = vunpack.c.l.b16 %v379
        %v467 = vunpack.c.h.b16 %v379
        %v468 = vunpack.c.l.b16 %v380
        %v469 = vunpack.c.h.b16 %v380
        %v470 = vunpack.c.l.b16 %v381
        %v471 = vunpack.c.h.b16 %v381
        %v472 = vunpack.c.l.b16 %v382
        %v473 = vunpack.c.h.b16 %v382
        %v474 = vunpack.c.l.b16 %v383
        %v475 = vunpack.c.h.b16 %v383
        %v476 = vunpack.c.l.b16 %v384
        %v477 = vunpack.c.h.b16 %v384
        %v478 = vunpack.c.l.b16 %v385
        %v479 = vunpack.c.h.b16 %v385
        %v480 = vunpack.c.l.b16 %v386
        %v481 = vunpack.c.h.b16 %v386
        %v482 = vunpack.c.l.b16 %v387
        %v483 = vunpack.c.h.b16 %v387
        %v484 = vunpack.c.l.b16 %v388
        %v485 = vunpack.c.h.b16 %v388
        %v486 = vunpack.c.l.b16 %v389
        %v487 = vunpack.c.h.b16 %v389
        %v488 = vunpack.c.l.b16 %v390
        %v489 = vunpack.c.h.b16 %v390
        %v490 = vunpack.c.l.b16 %v391
        %v491 = vunpack.c.h.b16 %v391
        %v492 = vunpack.c.l.b16 %v392
        %v493 = vunpack.c.h.b16 %v392
        %v494 = vunpack.c.l.b16 %v393
        %v495 = vunpack.c.h.b16 %v393
        %v496 = vunpack.c.l.b16 %v394
        %v497 = vunpack.c.h.b16 %v394
        %v498 = vunpack.c.l.b16 %v395
        %v499 = vunpack.c.h.b16 %v395
        %v500 = vunpack.c.l.b16 %v396
        %v501 = vunpack.c.h.b16 %v396
        %v502 = vunpack.c.l.b16 %v397
        %v503 = vunpack.c.h.b16 %v397
        %v504 = vunpack.c.l.b16 %v398
        %v505 = vunpack.c.h.b16 %v398
        %v506 = vunpack.c.l.b16 %v399
        %v507 = vunpack.c.h.b16 %v399
        %v508 = vpack.c.b16 %v446, %v444
        %v509 = vpack.c.b16 %v447, %v445
        %v510 = vpack.c.b16 %v450, %v448
        %v511 = vpack.c.b16 %v451, %v449
        %v512 = vpack.c.b16 %v454, %v452
        %v513 = vpack.c.b16 %v455, %v453
        %v514 = vpack.c.b16 %v458, %v456
        %v515 = vpack.c.b16 %v459, %v457
        %v516 = vpack.c.b16 %v462, %v460
        %v517 = vpack.c.b16 %v463, %v461
        %v518 = vpack.c.b16 %v466, %v464
        %v519 = vpack.c.b16 %v467, %v465
        %v520 = vpack.c.b16 %v470, %v468
        %v521 = vpack.c.b16 %v471, %v469
        %v522 = vpack.c.b16 %v474, %v472
        %v523 = vpack.c.b16 %v475, %v473
        %v524 = vpack.c.b16 %v478, %v476
        %v525 = vpack.c.b16 %v479, %v477
        %v526 = vpack.c.b16 %v482, %v480
        %v527 = vpack.c.b16 %v483, %v481
        %v528 = vpack.c.b16 %v486, %v484
        %v529 = vpack.c.b16 %v487, %v485
        %v530 = vpack.c.b16 %v490, %v488
        %v531 = vpack.c.b16 %v491, %v489
        %v532 = vpack.c.b16 %v494, %v492
        %v533 = vpack.c.b16 %v495, %v493
        %v534 = vpack.c.b16 %v498, %v496
        %v535 = vpack.c.b16 %v499, %v497
        %v536 = vpack.c.b16 %v502, %v500
        %v537 = vpack.c.b16 %v503, %v501
        %v538 = vpack.c.b16 %v506, %v504
        %v539 = vpack.c.b16 %v507, %v505
        %572 = vmatprep.subr.bf16.mxu0 %v523
        %573 = vmatpush1.bf16.msra.mxu0 %v522
        %574 = vmatprep.subr.bf16.mxu0 %v521
        %575 = vmatpush1.bf16.msra.mxu0 %v520
        %576 = vmatprep.subr.bf16.mxu0 %v519
        %577 = vmatpush1.bf16.msra.mxu0 %v518
        %578 = vmatprep.subr.bf16.mxu0 %v517
        %579 = vmatpush1.bf16.msra.mxu0 %v516
        %580 = vmatprep.subr.bf16.mxu0 %v515
        %581 = vmatpush1.bf16.msra.mxu0 %v514
        %582 = vmatprep.subr.bf16.mxu0 %v513
        %583 = vmatpush1.bf16.msra.mxu0 %v512
        %584 = vmatprep.subr.bf16.mxu0 %v511
        %585 = vmatpush1.bf16.msra.mxu0 %v510
        %586 = vmatprep.subr.bf16.mxu0 %v509
        %587 = vmatpush1.bf16.msra.mxu0 %v508
        %588 = vmatprep.subr.bf16.mxu0 %v539
        %589 = vmatpush2.bf16.msra.mxu0 %v538
        %590 = vmatprep.subr.bf16.mxu0 %v537
        %591 = vmatpush2.bf16.msra.mxu0 %v536
        %592 = vmatprep.subr.bf16.mxu0 %v535
        %593 = vmatpush2.bf16.msra.mxu0 %v534
        %594 = vmatprep.subr.bf16.mxu0 %v533
        %595 = vmatpush2.bf16.msra.mxu0 %v532
        %596 = vmatprep.subr.bf16.mxu0 %v531
        %597 = vmatpush2.bf16.msra.mxu0 %v530
        %598 = vmatprep.subr.bf16.mxu0 %v529
        %599 = vmatpush2.bf16.msra.mxu0 %v528
        %600 = vmatprep.subr.bf16.mxu0 %v527
        %601 = vmatpush2.bf16.msra.mxu0 %v526
        %602 = vmatprep.subr.bf16.mxu0 %v525
        %603 = vmatpush2.bf16.msra.mxu0 %v524
        %604 = vmatprep.mubr.bf16.mxu0 %v367
        %605 = vmatmul.mubr.bf16.gmra.mxu0 %v366
        %v606 = vpop.f32.mrf.mxu0
        %v607 = vadd.f32 %v405, %v606
        %v608 = vpop.f32.mrf.mxu0
        %v609 = vadd.f32 %v409, %v608
        %v610 = vpop.f32.mrf.mxu0
        %v611 = vpop.f32.mrf.mxu0
        %612 = vdwg.mxu0
        %v613 = vmax.f32 %v607, 0.0
        %v614 = vmax.f32 %v609, 0.0
        %v615 = vpack.c.bf16 %v613, %v613
        %v616 = vpack.c.bf16 %v614, %v614
        %v617 = vld [vmem:[%s272] sm:$0xf]
        %v618 = vld [vmem:[%s272 + $0x4] sm:$0xf]
        %v619 = vld [vmem:[%s272 + $0x8] sm:$0xf]
        %v620 = vld [vmem:[%s272 + $0xc] sm:$0xf]
        %v621 = vld [vmem:[%s272 + $0x10] sm:$0xf]
        %v622 = vld [vmem:[%s272 + $0x14] sm:$0xf]
        %v623 = vld [vmem:[%s272 + $0x18] sm:$0xf]
        %v624 = vld [vmem:[%s272 + $0x1c] sm:$0xf]
        %v625 = vld [vmem:[%s272 + $0x20] sm:$0xf]
        %v626 = vld [vmem:[%s272 + $0x24] sm:$0xf]
        %v627 = vld [vmem:[%s272 + $0x28] sm:$0xf]
        %v628 = vld [vmem:[%s272 + $0x2c] sm:$0xf]
        %v629 = vld [vmem:[%s272 + $0x30] sm:$0xf]
        %v630 = vld [vmem:[%s272 + $0x34] sm:$0xf]
        %v631 = vld [vmem:[%s272 + $0x38] sm:$0xf]
        %v632 = vld [vmem:[%s272 + $0x3c] sm:$0xf]
        %v633 = vld [vmem:[%s272 + $0x40] sm:$0xf]
        %v634 = vld [vmem:[%s272 + $0x44] sm:$0xf]
        %v635 = vld [vmem:[%s272 + $0x48] sm:$0xf]
        %v636 = vld [vmem:[%s272 + $0x4c] sm:$0xf]
        %v637 = vld [vmem:[%s272 + $0x50] sm:$0xf]
        %v638 = vld [vmem:[%s272 + $0x54] sm:$0xf]
        %v639 = vld [vmem:[%s272 + $0x58] sm:$0xf]
        %v640 = vld [vmem:[%s272 + $0x5c] sm:$0xf]
        %v641 = vld [vmem:[%s272 + $0x60] sm:$0xf]
        %v642 = vld [vmem:[%s272 + $0x64] sm:$0xf]
        %v643 = vld [vmem:[%s272 + $0x68] sm:$0xf]
        %v644 = vld [vmem:[%s272 + $0x6c] sm:$0xf]
        %v645 = vld [vmem:[%s272 + $0x70] sm:$0xf]
        %v646 = vld [vmem:[%s272 + $0x74] sm:$0xf]
        %v647 = vld [vmem:[%s272 + $0x78] sm:$0xf]
        %v648 = vld [vmem:[%s272 + $0x7c] sm:$0xf]
        %v681 = vunpack.c.l.b16 %v617
        %v682 = vunpack.c.l.b16 %v618
        %v683 = vunpack.c.l.b16 %v619
        %v684 = vunpack.c.l.b16 %v620
        %v685 = vunpack.c.l.b16 %v621
        %v686 = vunpack.c.l.b16 %v622
        %v687 = vunpack.c.l.b16 %v623
        %v688 = vunpack.c.l.b16 %v624
        %v689 = vunpack.c.l.b16 %v625
        %v690 = vunpack.c.l.b16 %v626
        %v691 = vunpack.c.l.b16 %v627
        %v692 = vunpack.c.l.b16 %v628
        %v693 = vunpack.c.l.b16 %v629
        %v694 = vunpack.c.l.b16 %v630
        %v695 = vunpack.c.l.b16 %v631
        %v696 = vunpack.c.l.b16 %v632
        %v697 = vunpack.c.l.b16 %v633
        %v698 = vunpack.c.l.b16 %v634
        %v699 = vunpack.c.l.b16 %v635
        %v700 = vunpack.c.l.b16 %v636
        %v701 = vunpack.c.l.b16 %v637
        %v702 = vunpack.c.l.b16 %v638
        %v703 = vunpack.c.l.b16 %v639
        %v704 = vunpack.c.l.b16 %v640
        %v705 = vunpack.c.l.b16 %v641
        %v706 = vunpack.c.l.b16 %v642
        %v707 = vunpack.c.l.b16 %v643
        %v708 = vunpack.c.l.b16 %v644
        %v709 = vunpack.c.l.b16 %v645
        %v710 = vunpack.c.l.b16 %v646
        %v711 = vunpack.c.l.b16 %v647
        %v712 = vunpack.c.l.b16 %v648
        %v713 = vpack.c.b16 %v682, %v681
        %v714 = vpack.c.b16 %v684, %v683
        %v715 = vpack.c.b16 %v686, %v685
        %v716 = vpack.c.b16 %v688, %v687
        %v717 = vpack.c.b16 %v690, %v689
        %v718 = vpack.c.b16 %v692, %v691
        %v719 = vpack.c.b16 %v694, %v693
        %v720 = vpack.c.b16 %v696, %v695
        %v721 = vpack.c.b16 %v698, %v697
        %v722 = vpack.c.b16 %v700, %v699
        %v723 = vpack.c.b16 %v702, %v701
        %v724 = vpack.c.b16 %v704, %v703
        %v725 = vpack.c.b16 %v706, %v705
        %v726 = vpack.c.b16 %v708, %v707
        %v727 = vpack.c.b16 %v710, %v709
        %v728 = vpack.c.b16 %v712, %v711
        %745 = vmatprep.subr.bf16.mxu0 0
        %746 = vmatpush1.bf16.msra.mxu0 %v720
        %747 = vmatprep.subr.bf16.mxu0 0
        %748 = vmatpush1.bf16.msra.mxu0 %v719
        %749 = vmatprep.subr.bf16.mxu0 0
        %750 = vmatpush1.bf16.msra.mxu0 %v718
        %751 = vmatprep.subr.bf16.mxu0 0
        %752 = vmatpush1.bf16.msra.mxu0 %v717
        %753 = vmatprep.subr.bf16.mxu0 0
        %754 = vmatpush1.bf16.msra.mxu0 %v716
        %755 = vmatprep.subr.bf16.mxu0 0
        %756 = vmatpush1.bf16.msra.mxu0 %v715
        %757 = vmatprep.subr.bf16.mxu0 0
        %758 = vmatpush1.bf16.msra.mxu0 %v714
        %759 = vmatprep.subr.bf16.mxu0 0
        %760 = vmatpush1.bf16.msra.mxu0 %v713
        %761 = vmatprep.subr.bf16.mxu0 0
        %762 = vmatpush2.bf16.msra.mxu0 %v728
        %763 = vmatprep.subr.bf16.mxu0 0
        %764 = vmatpush2.bf16.msra.mxu0 %v727
        %765 = vmatprep.subr.bf16.mxu0 0
        %766 = vmatpush2.bf16.msra.mxu0 %v726
        %767 = vmatprep.subr.bf16.mxu0 0
        %768 = vmatpush2.bf16.msra.mxu0 %v725
        %769 = vmatprep.subr.bf16.mxu0 0
        %770 = vmatpush2.bf16.msra.mxu0 %v724
        %771 = vmatprep.subr.bf16.mxu0 0
        %772 = vmatpush2.bf16.msra.mxu0 %v723
        %773 = vmatprep.subr.bf16.mxu0 0
        %774 = vmatpush2.bf16.msra.mxu0 %v722
        %775 = vmatprep.subr.bf16.mxu0 0
        %776 = vmatpush2.bf16.msra.mxu0 %v721
        %777 = vmatprep.mubr.bf16.mxu0 %v616
        %778 = vmatmul.mubr.bf16.gmra.mxu0 %v615
        %v779 = vpop.f32.mrf.mxu0
        %v780 = vadd.f32 0.0, %v779
        %v781 = vpop.f32.mrf.mxu0
        %v782 = vpop.f32.mrf.mxu0
        %v783 = vpop.f32.mrf.mxu0
        %784 = vdwg.mxu0
        %v785 = vld [vmem:[%s331] sm:$0x3f]
        %v786 = vmul.f32 %v780, %v785
        %v787 = vld [vmem:[#allocation5] sm:$0x3]
        %v789 = vcombine.high %v786, %v786
        %v791 = vunpack.c.l.s4 1983009808
        %v792 = vunpack.c.0.s8 %v791
        %v793 = vlaneseq
        %v794 = vshrl.u32 %v793, 7
        %v795 = vsub.s32 %v792, %v794
        %v796 = vrot.slane %v786, %v795
        %v798 = vunpack.c.l.s4 1983009808
        %v799 = vunpack.c.0.s8 %v798
        %v800 = vlaneseq
        %v801 = vshrl.u32 %v800, 7
        %v802 = vsub.s32 %v799, %v801
        %v803 = vrot.slane %v789, %v802
        %v804 = vcombine.high %v796, %v796
        %vm808 = vcmask 1041408
        %v809 = vsel %vm808, %v796, 0.0
        %v810 = vsel %vm808, %v804, 0.0
        %v811 = vadd.f32 %v809, %v810
        %v812 = vsel %vm808, %v803, 0.0
        %v813 = vadd.f32 %v811, %v812
        %v814 = vadd.f32 %v787, %v813
        %815 = vst [vmem:[#allocation5] sm:$0x3] %v814
        %p816 = scmp.eq.s32.totalorder %s21, 6
        // Predicated region
        $region53: #{_trn_forward.1} parent=43 // pred_check
          %p817 = pneg %p816
        $region54: #{_trn_forward.1} parent=43 // pred_check_branch
          %819 = sbr.rel (%p817) target = $region56
        $region55: #{_trn_forward.1} parent=43 // pred_region
          %v820 = vld [vmem:[#allocation5] sm:$0x3]
          %v821 = vld [vmem:[%s5] sm:$0x1]
          %v823 = vlaneseq
          %v824 = vshrl.u32 %v823, 7
          %v825 = vsub.s32 0, %v824
          %v826 = vrot.slane %v821, %v825
          %v828 = vadd.f32 %v820, %v826
          %829 = vst [vmem:[#allocation5] sm:$0x3] %v828
        $region56: #{_trn_forward.1} parent=43 // pred_fallthru
          _
        // Predicated region
        $region57: #{_trn_forward.1} parent=43 // pred_check
          %p830 = pneg %p185
        $region58: #{_trn_forward.1} parent=43 // pred_check_branch
          %832 = sbr.rel (%p830) target = $region60
        $region59: #{_trn_forward.1} parent=43 // pred_region
          %s834 = ssub.s32 32, 32
          %835 = vsyncadd [#allocation4], %s834
          %s837 = sshll.u32 [#allocation5], 4
          %s838 = int_to_ptr.vmem [resolvable:$true] %s837
          %840 = dma.vmem_to_hbm [thread:$0]  %s838, 32, %s6, [#allocation4]
        $region60: #{_trn_forward.1} parent=43 // pred_fallthru
          _
        // Predicated region
        $region61: #{_trn_forward.1} parent=43 // pred_check
          %p841 = pneg %p185
        $region62: #{_trn_forward.1} parent=43 // pred_check_branch
          %843 = sbr.rel (%p841) target = $region64
        $region63: #{_trn_forward.1} parent=43 // pred_region
          %844 = dma.done [#allocation4], 32
        $region64: #{_trn_forward.1} parent=43 // pred_fallthru
          _
      $region44: #{_trn_forward.1} parent=5 // pred_fallthru
        _
      %p845 = scmp.le.s32.totalorder 2, %s16
      // Predicated region
      $region65: #{_trn_forward.1} parent=5 // pred_check
        %p846 = pneg %p845
      $region66: #{_trn_forward.1} parent=5 // pred_check_branch
        %848 = sbr.rel (%p846) target = $region68
      $region67: #{_trn_forward.1} parent=5 // pred_region
        %s849 = ssub.s32 %s16, 2
      $region68: #{_trn_forward.1} parent=5 // pred_fallthru
        _
    $region6: #{_trn_forward.1} parent=1 // loop_footer
      %s20 = sadd.s32 1, %s16
    $region7: #{_trn_forward.1} parent=1 // loop_footer_branch
      %15 = sbr.rel target = $region3
    $region8: #{_trn_forward.1} parent=1 // loop_exit
      _
    %850 = vsyncpa [#allocation3], 1
    %s851 = scalar_lea.sflag [#allocation3], 1
    %852 = vsyncpa %s851, 1
    %853 = vsyncpa [#allocation4], 1
    %s854 = scalar_lea.sflag [#allocation4], 1
    %855 = vsyncpa %s854, 1

</llo_original>
